<compile_context>
chip_gen: v7x
topology: tpu7x:2x2x1
jax: 0.10.0
libtpu: 0.0.40
codegen_flags: <defaults>
</compile_context>

<pallas_src>
import functools

import jax
import jax.numpy as jnp
from jax.experimental import pallas as pl
from jax.experimental.pallas import tpu as pltpu

BN_EPS = 1e-5
LANE = 128
_RESIDENT_WEIGHT_BUDGET = 40 * 1024 * 1024  # v7x-safe (64 MiB VMEM per TC)


def _round_up(x, m):
    return ((x + m - 1) // m) * m


# ----------------------------------------------------------------------------
# Kernel
# ----------------------------------------------------------------------------
def _make_fused_mlp_kernel(num_layers):
    """Builds a kernel for `num_layers` fused (Linear+BN-folded+ReLU) blocks.

    Ref order: x_ref, w0, b0, w1, b1, ..., out_ref
    Intermediate activations live in vregs/VMEM managed by Mosaic (never HBM).
    """

    def kernel(x_ref, *refs):
        out_ref = refs[-1]
        h = x_ref[...]  # (tm, D0_pad) bf16
        for l in range(num_layers):
            w = refs[2 * l][...]       # (Dl_pad, Dl+1_pad) bf16 (BN folded in)
            b = refs[2 * l + 1][...]   # (1, Dl+1_pad)      f32  (BN folded in)
            # bf16 MXU matmul, f32 accumulate; epilogue stays f32 (v5e-safe).
            y = jnp.dot(h.astype(jnp.bfloat16), w,
                        preferred_element_type=jnp.float32)
            h = jnp.maximum(y + b, 0.0)
        out_ref[...] = h.astype(out_ref.dtype)

    return kernel


def _resident_spec(shape, single_buffer):
    """BlockSpec for a grid-invariant (VMEM-resident) operand."""
    index_map = lambda i: (0,) * len(shape)
    if single_buffer:
        # Constant index_map -> no need to double-buffer; halves weight VMEM.
        return pl.BlockSpec(shape, index_map, pipeline_mode=pl.Buffered(1))
    return pl.BlockSpec(shape, index_map)


# ----------------------------------------------------------------------------
# Wrapper
# ----------------------------------------------------------------------------
@functools.partial(jax.jit, static_argnames=("d_out", "tm", "single_buffer_weights"))
def mlp_encoder_forward(x, weights, biases, *, d_out, tm=512,
                        single_buffer_weights=True):
    """Fused MLPEncoder forward.

    x:       (N, Din) float32
    weights: tuple of (Dl_pad, Dl+1_pad) bf16 arrays (BN folded, zero-padded to x128)
    biases:  tuple of (1, Dl+1_pad)      f32  arrays (BN folded, zero-padded)
    d_out:   true (unpadded) final feature dim
    tm:      batch tile rows (default 512: multiple of 256 for the 2x256 MXU).
    """
    n, d_in = x.shape
    num_layers = len(weights)
    d0_pad = weights[0].shape[0]
    d_last_pad = weights[-1].shape[1]

    # --- batch tiling ---------------------------------------------------------
    #  * no host-side row padding: Pallas clips the ragged last block
    #  * keep >= 2 tiles when N allows so both v7x TensorCores get work
    #  * tm must stay a multiple of 8 (sublane constraint)
    tm = max(8, min(tm, _round_up(pl.cdiv(n, 2), 8)))
    tm = _round_up(tm, 8)
    grid = (pl.cdiv(n, tm),)

    # --- input prep: one fused column-pad + bf16 cast (halves x DMA bytes) -----
    if d0_pad != d_in:
        x_in = jnp.pad(x, ((0, 0), (0, d0_pad - d_in))).astype(jnp.bfloat16)
    else:
        x_in = x.astype(jnp.bfloat16)

    # --- specs ------------------------------------------------------------------
    in_specs = [pl.BlockSpec((tm, d0_pad), lambda i: (i, 0))]
    args = [x_in]
    flops = 0
    weight_bytes = 0
    for w, b in zip(weights, biases):
        in_specs.append(_resident_spec(w.shape, single_buffer_weights))
        in_specs.append(_resident_spec(b.shape, single_buffer_weights))
        args.extend([w, b])
        flops += 2 * grid[0] * tm * w.shape[0] * w.shape[1]
        weight_bytes += w.size * w.dtype.itemsize + b.size * b.dtype.itemsize

    out_specs = pl.BlockSpec((tm, d_last_pad), lambda i: (i, 0))

    # --- VMEM budgeting ---------------------------------------------------------
    wb_bufs = 1 if single_buffer_weights else 2
    resident_bytes = wb_bufs * weight_bytes
    if resident_bytes > _RESIDENT_WEIGHT_BUDGET:
        # TODO(synk): stream weights per layer (layer grid axis / emit_pipeline)
        # when the folded weight set exceeds a v7x-safe resident-VMEM budget.
        raise NotImplementedError(
            f"resident folded weights ({resident_bytes} bytes) exceed the "
            f"{_RESIDENT_WEIGHT_BUDGET}-byte VMEM budget; weight streaming not "
            "implemented")

    x_tile_bytes = tm * d0_pad * 2          # bf16, double-buffered
    out_tile_bytes = tm * d_last_pad * 4    # f32,  double-buffered
    act_bytes = sum(tm * w.shape[1] * 4 for w in weights)  # f32 intermediates
    vmem_needed = (2 * x_tile_bytes + 2 * out_tile_bytes
                   + resident_bytes + act_bytes)
    vmem_limit = int(min(vmem_needed + (8 << 20), 100 << 20))

    cost = pl.CostEstimate(
        flops=flops,
        transcendentals=0,
        bytes_accessed=x_in.size * 2 + n * d_last_pad * 4 + weight_bytes,
    )

    out = pl.pallas_call(
        _make_fused_mlp_kernel(num_layers),
        out_shape=jax.ShapeDtypeStruct((n, d_last_pad), jnp.float32),
        grid=grid,
        in_specs=in_specs,
        out_specs=out_specs,
        compiler_params=pltpu.CompilerParams(
            dimension_semantics=("parallel",),   # shard batch tiles across TCs
            vmem_limit_bytes=vmem_limit,
        ),
        cost_estimate=cost,
    )(*args)

    return out[:, :d_out]


# ----------------------------------------------------------------------------
# Parameter construction (torch-layout) + host-side BN folding / padding
# ----------------------------------------------------------------------------
def init_mlp_encoder_params(key, input_dim, hidden_dims):
    """Raw params matching torch layouts.

    Linear: weight (Dout, Din), bias (Dout,).
    BatchNorm1d: gamma=1, beta=0, running_mean=0, running_var=1 (PyTorch defaults),
    then perturbed slightly so the BN folding is actually exercised.
    """
    params = []
    last_dim = input_dim
    for h in hidden_dims:
        key, kw, kb, kg, kbeta, km, kv = jax.random.split(key, 7)
        bound = 1.0 / jnp.sqrt(jnp.float32(last_dim))
        params.append(dict(
            w=jax.random.uniform(kw, (h, last_dim), jnp.float32, -bound, bound),
            b=jax.random.uniform(kb, (h,), jnp.float32, -bound, bound),
            gamma=1.0 + 0.1 * jax.random.normal(kg, (h,), jnp.float32),
            beta=0.1 * jax.random.normal(kbeta, (h,), jnp.float32),
            running_mean=0.1 * jax.random.normal(km, (h,), jnp.float32),
            running_var=1.0 + 0.1 * jax.random.uniform(kv, (h,), jnp.float32),
        ))
        last_dim = h
    return params


def fold_and_pad_params(params, input_dim):
    """Fold eval-mode BN + bias into the Linear weights; pad feature dims to 128.

    Returns (weights, biases): per layer a bf16 (Din_pad, Dout_pad) weight and a
    f32 (1, Dout_pad) bias, zero-padded so padded lanes stay identically zero
    through ReLU and are inert in the next layer.
    """
    weights, biases = [], []
    last_dim = input_dim
    for p in params:
        d_out, d_in = p["w"].shape
        assert d_in == last_dim
        scale = p["gamma"] / jnp.sqrt(p["running_var"] + BN_EPS)          # (Dout,)
        w_eff = p["w"] * scale[:, None]                                    # (Dout, Din)
        b_eff = (p["b"] - p["running_mean"]) * scale + p["beta"]           # (Dout,)

        din_pad = _round_up(d_in, LANE)
        dout_pad = _round_up(d_out, LANE)
        w_p = jnp.zeros((din_pad, dout_pad), jnp.float32)
        w_p = w_p.at[:d_in, :d_out].set(w_eff.T)
        b_p = jnp.zeros((1, dout_pad), jnp.float32)
        b_p = b_p.at[0, :d_out].set(b_eff)

        weights.append(w_p.astype(jnp.bfloat16))
        biases.append(b_p)
        last_dim = d_out
    return tuple(weights), tuple(biases)


# ----------------------------------------------------------------------------
# References
# ----------------------------------------------------------------------------
def _reference_forward_eval(x, params):
    """Pure-JAX f32 eval-mode reference (unfolded BN): semantic ground truth."""
    h = x
    for p in params:
        y = h @ p["w"].T + p["b"]
        y = (y - p["running_mean"]) / jnp.sqrt(p["running_var"] + BN_EPS)
        y = y * p["gamma"] + p["beta"]
        h = jnp.maximum(y, 0.0)
    return h


def _reference_forward_folded(x, weights, biases, d_out):
    """Same math as the kernel (folded bf16 weights, f32 accumulate/epilogue)."""
    d0_pad = weights[0].shape[0]
    h = jnp.pad(x, ((0, 0), (0, d0_pad - x.shape[1])))
    for w, b in zip(weights, biases):
        y = jnp.dot(h.astype(jnp.bfloat16), w, preferred_element_type=jnp.float32)
        h = jnp.maximum(y + b, 0.0)
    return h[:, :d_out]


# ----------------------------------------------------------------------------
if __name__ == "__main__":
    batch = 8
    input_dim = 32
    hidden_dims = (64, 32)
    dropout_rate = 0.1  # eval mode -> identity

    key = jax.random.PRNGKey(0)
    key, kx = jax.random.split(key)
    x = jax.random.normal(kx, (batch, input_dim), jnp.float32)

    raw_params = init_mlp_encoder_params(key, input_dim, hidden_dims)
    weights, biases = fold_and_pad_params(raw_params, input_dim)

    try:
        out = jax.block_until_ready(
            mlp_encoder_forward(x, weights, biases, d_out=hidden_dims[-1]))
    except Exception:
        # Compatibility fallback: if this jax build rejects Buffered(1) in the
        # implicit pallas_call pipeline, retry with default double-buffering.
        out = jax.block_until_ready(
            mlp_encoder_forward(x, weights, biases, d_out=hidden_dims[-1],
                                single_buffer_weights=False))

    assert out.shape == (batch, hidden_dims[-1])

    # Exact-path check (same folded bf16 weights / f32 accumulation).
    ref_exact = _reference_forward_folded(x, weights, biases, hidden_dims[-1])
    assert jnp.allclose(out, ref_exact, atol=1e-3, rtol=1e-3), "mismatch vs folded reference"

    # Semantic check against the unfolded f32 eval-mode BN path (bf16 rounding slack).
    ref_sem = _reference_forward_eval(x, raw_params)
    assert jnp.allclose(out, ref_sem, atol=5e-2, rtol=5e-2), "mismatch vs f32 eval-mode reference"

    print("KERNEL_OK")
</pallas_src>

<mosaic_0001>
module attributes {stable_mosaic.version = 11 : i64} {
  func.func @kernel(%arg0: i32, %arg1: memref<8x128xbf16, #tpu.memory_space<vmem>>, %arg2: memref<128x128xbf16, #tpu.memory_space<vmem>>, %arg3: memref<1x128xf32, #tpu.memory_space<vmem>>, %arg4: memref<128x128xbf16, #tpu.memory_space<vmem>>, %arg5: memref<1x128xf32, #tpu.memory_space<vmem>>, %arg6: memref<8x128xf32, #tpu.memory_space<vmem>>) attributes {dimension_semantics = [#tpu.dimension_semantics<parallel>], iteration_bounds = array<i64: 1>, scalar_prefetch = 0 : i64, scratch_operands = 0 : i64, tpu.core_type = #tpu.core_type<tc>, window_params = [{transform_indices = @transform_0, window_bounds = array<i64: 8, 128>}, {pipeline_mode = #tpu.pipeline_mode<synchronous>, transform_indices = @transform_1, window_bounds = array<i64: 128, 128>}, {pipeline_mode = #tpu.pipeline_mode<synchronous>, transform_indices = @transform_2, window_bounds = array<i64: 1, 128>}, {pipeline_mode = #tpu.pipeline_mode<synchronous>, transform_indices = @transform_3, window_bounds = array<i64: 128, 128>}, {pipeline_mode = #tpu.pipeline_mode<synchronous>, transform_indices = @transform_4, window_bounds = array<i64: 1, 128>}, {transform_indices = @transform_5, window_bounds = array<i64: 8, 128>}]} {
    %c0 = arith.constant 0 : index
    %c0_0 = arith.constant 0 : index
    %0 = vector.load %arg1[%c0, %c0_0] : memref<8x128xbf16, #tpu.memory_space<vmem>>, vector<8x128xbf16>
    %c0_1 = arith.constant 0 : index
    %c0_2 = arith.constant 0 : index
    %1 = vector.load %arg2[%c0_1, %c0_2] : memref<128x128xbf16, #tpu.memory_space<vmem>>, vector<128x128xbf16>
    %c0_3 = arith.constant 0 : index
    %c0_4 = arith.constant 0 : index
    %2 = vector.load %arg3[%c0_3, %c0_4] : memref<1x128xf32, #tpu.memory_space<vmem>>, vector<1x128xf32>
    %cst = arith.constant dense<0.000000e+00> : vector<8x128xf32>
    %3 = tpu.matmul %0, %1, %cst {dimension_numbers = #tpu.dot_dimension_numbers<[1], [0], [0], [1], [0, 0, 1, 1], [], []>} : vector<8x128xbf16>, vector<128x128xbf16>, vector<8x128xf32> -> vector<8x128xf32>
    %4 = vector.broadcast %2 : vector<1x128xf32> to vector<8x128xf32>
    %5 = arith.addf %3, %4 : vector<8x128xf32>
    %cst_5 = arith.constant 0.000000e+00 : f32
    %6 = vector.broadcast %cst_5 : f32 to vector<8x128xf32>
    %7 = arith.maximumf %5, %6 : vector<8x128xf32>
    %c0_6 = arith.constant 0 : index
    %c0_7 = arith.constant 0 : index
    %8 = vector.load %arg4[%c0_6, %c0_7] : memref<128x128xbf16, #tpu.memory_space<vmem>>, vector<128x128xbf16>
    %c0_8 = arith.constant 0 : index
    %c0_9 = arith.constant 0 : index
    %9 = vector.load %arg5[%c0_8, %c0_9] : memref<1x128xf32, #tpu.memory_space<vmem>>, vector<1x128xf32>
    %10 = arith.truncf %7 : vector<8x128xf32> to vector<8x128xbf16>
    %cst_10 = arith.constant dense<0.000000e+00> : vector<8x128xf32>
    %11 = tpu.matmul %10, %8, %cst_10 {dimension_numbers = #tpu.dot_dimension_numbers<[1], [0], [0], [1], [0, 0, 1, 1], [], []>} : vector<8x128xbf16>, vector<128x128xbf16>, vector<8x128xf32> -> vector<8x128xf32>
    %12 = vector.broadcast %9 : vector<1x128xf32> to vector<8x128xf32>
    %13 = arith.addf %11, %12 : vector<8x128xf32>
    %cst_11 = arith.constant 0.000000e+00 : f32
    %14 = vector.broadcast %cst_11 : f32 to vector<8x128xf32>
    %15 = arith.maximumf %13, %14 : vector<8x128xf32>
    %c0_12 = arith.constant 0 : index
    %c0_13 = arith.constant 0 : index
    %16 = vector.load %arg6[%c0_12, %c0_13] : memref<8x128xf32, #tpu.memory_space<vmem>>, vector<8x128xf32>
    tpu.vector_store %arg6[%c0_12, %c0_13], %15 {strides = array<i32>} : memref<8x128xf32, #tpu.memory_space<vmem>>, vector<8x128xf32>,
    return
  }
  func.func @transform_0(%arg0: i32) -> (i32, i32) {
    %c0_i32 = arith.constant 0 : i32
    %c0_i32_0 = arith.constant 0 : i32
    return %arg0, %c0_i32 : i32, i32
  }
  func.func @transform_1(%arg0: i32) -> (i32, i32) {
    %c0_i32 = arith.constant 0 : i32
    %c0_i32_0 = arith.constant 0 : i32
    %c0_i32_1 = arith.constant 0 : i32
    return %c0_i32, %c0_i32_0 : i32, i32
  }
  func.func @transform_2(%arg0: i32) -> (i32, i32) {
    %c0_i32 = arith.constant 0 : i32
    %c0_i32_0 = arith.constant 0 : i32
    %c0_i32_1 = arith.constant 0 : i32
    return %c0_i32, %c0_i32_0 : i32, i32
  }
  func.func @transform_3(%arg0: i32) -> (i32, i32) {
    %c0_i32 = arith.constant 0 : i32
    %c0_i32_0 = arith.constant 0 : i32
    %c0_i32_1 = arith.constant 0 : i32
    return %c0_i32, %c0_i32_0 : i32, i32
  }
  func.func @transform_4(%arg0: i32) -> (i32, i32) {
    %c0_i32 = arith.constant 0 : i32
    %c0_i32_0 = arith.constant 0 : i32
    %c0_i32_1 = arith.constant 0 : i32
    return %c0_i32, %c0_i32_0 : i32, i32
  }
  func.func @transform_5(%arg0: i32) -> (i32, i32) {
    %c0_i32 = arith.constant 0 : i32
    %c0_i32_0 = arith.constant 0 : i32
    return %arg0, %c0_i32 : i32, i32
  }
}

module attributes {stable_mosaic.version = 11 : i64} {
  func.func @kernel(%arg0: i32, %arg1: memref<8x128xbf16, #tpu.memory_space<vmem>>, %arg2: memref<128x128xbf16, #tpu.memory_space<vmem>>, %arg3: memref<1x128xf32, #tpu.memory_space<vmem>>, %arg4: memref<128x128xbf16, #tpu.memory_space<vmem>>, %arg5: memref<1x128xf32, #tpu.memory_space<vmem>>, %arg6: memref<8x128xf32, #tpu.memory_space<vmem>>) attributes {dimension_semantics = [#tpu.dimension_semantics<parallel>], iteration_bounds = array<i64: 1>, scalar_prefetch = 0 : i64, scratch_operands = 0 : i64, tpu.core_type = #tpu.core_type<tc>, window_params = [{transform_indices = @transform_0, window_bounds = array<i64: 8, 128>}, {pipeline_mode = #tpu.pipeline_mode<synchronous>, transform_indices = @transform_1, window_bounds = array<i64: 128, 128>}, {pipeline_mode = #tpu.pipeline_mode<synchronous>, transform_indices = @transform_2, window_bounds = array<i64: 1, 128>}, {pipeline_mode = #tpu.pipeline_mode<synchronous>, transform_indices = @transform_3, window_bounds = array<i64: 128, 128>}, {pipeline_mode = #tpu.pipeline_mode<synchronous>, transform_indices = @transform_4, window_bounds = array<i64: 1, 128>}, {transform_indices = @transform_5, window_bounds = array<i64: 8, 128>}]} {
    %c0 = arith.constant 0 : index
    %c0_0 = arith.constant 0 : index
    %0 = vector.load %arg1[%c0, %c0_0] : memref<8x128xbf16, #tpu.memory_space<vmem>>, vector<8x128xbf16>
    %c0_1 = arith.constant 0 : index
    %c0_2 = arith.constant 0 : index
    %1 = vector.load %arg2[%c0_1, %c0_2] : memref<128x128xbf16, #tpu.memory_space<vmem>>, vector<128x128xbf16>
    %c0_3 = arith.constant 0 : index
    %c0_4 = arith.constant 0 : index
    %2 = vector.load %arg3[%c0_3, %c0_4] : memref<1x128xf32, #tpu.memory_space<vmem>>, vector<1x128xf32>
    %cst = arith.constant dense<0.000000e+00> : vector<8x128xf32>
    %3 = tpu.matmul %0, %1, %cst {dimension_numbers = #tpu.dot_dimension_numbers<[1], [0], [0], [1], [0, 0, 1, 1], [], []>} : vector<8x128xbf16>, vector<128x128xbf16>, vector<8x128xf32> -> vector<8x128xf32>
    %4 = vector.broadcast %2 : vector<1x128xf32> to vector<8x128xf32>
    %5 = arith.addf %3, %4 : vector<8x128xf32>
    %cst_5 = arith.constant 0.000000e+00 : f32
    %6 = vector.broadcast %cst_5 : f32 to vector<8x128xf32>
    %7 = arith.maximumf %5, %6 : vector<8x128xf32>
    %c0_6 = arith.constant 0 : index
    %c0_7 = arith.constant 0 : index
    %8 = vector.load %arg4[%c0_6, %c0_7] : memref<128x128xbf16, #tpu.memory_space<vmem>>, vector<128x128xbf16>
    %c0_8 = arith.constant 0 : index
    %c0_9 = arith.constant 0 : index
    %9 = vector.load %arg5[%c0_8, %c0_9] : memref<1x128xf32, #tpu.memory_space<vmem>>, vector<1x128xf32>
    %10 = arith.truncf %7 : vector<8x128xf32> to vector<8x128xbf16>
    %cst_10 = arith.constant dense<0.000000e+00> : vector<8x128xf32>
    %11 = tpu.matmul %10, %8, %cst_10 {dimension_numbers = #tpu.dot_dimension_numbers<[1], [0], [0], [1], [0, 0, 1, 1], [], []>} : vector<8x128xbf16>, vector<128x128xbf16>, vector<8x128xf32> -> vector<8x128xf32>
    %12 = vector.broadcast %9 : vector<1x128xf32> to vector<8x128xf32>
    %13 = arith.addf %11, %12 : vector<8x128xf32>
    %cst_11 = arith.constant 0.000000e+00 : f32
    %14 = vector.broadcast %cst_11 : f32 to vector<8x128xf32>
    %15 = arith.maximumf %13, %14 : vector<8x128xf32>
    %c0_12 = arith.constant 0 : index
    %c0_13 = arith.constant 0 : index
    %16 = vector.load %arg6[%c0_12, %c0_13] : memref<8x128xf32, #tpu.memory_space<vmem>>, vector<8x128xf32>
    tpu.vector_store %arg6[%c0_12, %c0_13], %15 {strides = array<i32>} : memref<8x128xf32, #tpu.memory_space<vmem>>, vector<8x128xf32>,
    return
  }
  func.func @transform_0(%arg0: i32) -> (i32, i32) {
    %c0_i32 = arith.constant 0 : i32
    %c0_i32_0 = arith.constant 0 : i32
    return %arg0, %c0_i32 : i32, i32
  }
  func.func @transform_1(%arg0: i32) -> (i32, i32) {
    %c0_i32 = arith.constant 0 : i32
    %c0_i32_0 = arith.constant 0 : i32
    %c0_i32_1 = arith.constant 0 : i32
    return %c0_i32, %c0_i32_0 : i32, i32
  }
  func.func @transform_2(%arg0: i32) -> (i32, i32) {
    %c0_i32 = arith.constant 0 : i32
    %c0_i32_0 = arith.constant 0 : i32
    %c0_i32_1 = arith.constant 0 : i32
    return %c0_i32, %c0_i32_0 : i32, i32
  }
  func.func @transform_3(%arg0: i32) -> (i32, i32) {
    %c0_i32 = arith.constant 0 : i32
    %c0_i32_0 = arith.constant 0 : i32
    %c0_i32_1 = arith.constant 0 : i32
    return %c0_i32, %c0_i32_0 : i32, i32
  }
  func.func @transform_4(%arg0: i32) -> (i32, i32) {
    %c0_i32 = arith.constant 0 : i32
    %c0_i32_0 = arith.constant 0 : i32
    %c0_i32_1 = arith.constant 0 : i32
    return %c0_i32, %c0_i32_0 : i32, i32
  }
  func.func @transform_5(%arg0: i32) -> (i32, i32) {
    %c0_i32 = arith.constant 0 : i32
    %c0_i32_0 = arith.constant 0 : i32
    return %arg0, %c0_i32 : i32, i32
  }
}

</mosaic_0001>

<llo_original>
// kernel: mlp_encoder_forward.1
$region0: #{mlp_encoder_forward.1}
  #allocation0 [shape = 'u32[]', space=smem, size = 0x4, offset = 0x4, fixed_abs, tag = 'smem constant byte address 0x4 - core index']
  #allocation1 [shape = 'u32[144,128]{1,0:T(1,128)}', space=vmem, size = 0x12000, scoped, tag = 'internal scratch']
  %s0 = inlined_call_operand.vmem [shape: bf16[8,128], index: 0, kind: input, shape index: {}]
  %s1 = inlined_call_operand.hbm [shape: bf16[128,128], index: 1, kind: input, shape index: {}]
  %s2 = inlined_call_operand.vmem [shape: f32[1,128], index: 2, kind: input, shape index: {}]
  %s3 = inlined_call_operand.hbm [shape: bf16[128,128], index: 3, kind: input, shape index: {}]
  %s4 = inlined_call_operand.vmem [shape: f32[1,128], index: 4, kind: input, shape index: {}]
  %s5 = inlined_call_operand.hbm [shape: f32[8,128], index: 5, kind: output, shape index: {}]
  %s6 = sld [smem:[#allocation0]]
  $region38: #{mlp_encoder_forward.1} parent=0
    _
  %s8 = ssub.s32 1, %s6
  %s9 = scalar_select 0, %s8, %s6
  $region1: #{mlp_encoder_forward.1} parent=0
    #allocation2 [shape = 'u8[32768]{0}', space=vmem, size = 0x8000, scoped, tag = 'input window, operand 1, single buffered']
    #allocation3 [shape = 's32[1]{0}', space=sflag, size = 0x4, scoped, tag = 'scoped memory for mlp_encoder_forward.1']
    #allocation4 [shape = 's32[1]{0}', space=sflag, size = 0x4, scoped, tag = 'scoped memory for mlp_encoder_forward.1']
    #allocation5 [shape = 'u8[32768]{0}', space=vmem, size = 0x8000, scoped, tag = 'input window, operand 3, single buffered']
    #allocation6 [shape = 's32[1]{0}', space=sflag, size = 0x4, scoped, tag = 'scoped memory for mlp_encoder_forward.1']
    #allocation7 [shape = 'u8[4096]{0}', space=vmem, size = 0x1000, scoped, tag = 'output window, operand 0, single buffered']
    %10 = vsyncpa [#allocation3], 0
    %11 = vsyncpa [#allocation6], 0
    %12 = vsyncpa [#allocation4], 0
    // Predicated region
    $region2: #{mlp_encoder_forward.1} parent=1 // pred_check
      _
    $region3: #{mlp_encoder_forward.1} parent=1 // pred_check_branch
      %14 = sbr.rel (0) target = $region5
    $region4: #{mlp_encoder_forward.1} parent=1 // pred_region
      _
    $region5: #{mlp_encoder_forward.1} parent=1 // pred_fallthru
      _
    // Predicated region
    $region6: #{mlp_encoder_forward.1} parent=1 // pred_check
      _
    $region7: #{mlp_encoder_forward.1} parent=1 // pred_check_branch
      %16 = sbr.rel (0) target = $region9
    $region8: #{mlp_encoder_forward.1} parent=1 // pred_region
      %s18 = ssub.s32 1024, 1024
      %19 = vsyncadd [#allocation3], %s18
      %s20 = sshll.u32 [#allocation2], 4
      %s21 = int_to_ptr.vmem [resolvable:$true] %s20
      %26 = dma.hbm_to_vmem [thread:$0]  %s1, 1024, %s21, [#allocation3], 64, 64, 4
    $region9: #{mlp_encoder_forward.1} parent=1 // pred_fallthru
      _
    // Predicated region
    $region10: #{mlp_encoder_forward.1} parent=1 // pred_check
      _
    $region11: #{mlp_encoder_forward.1} parent=1 // pred_check_branch
      %28 = sbr.rel (0) target = $region13
    $region12: #{mlp_encoder_forward.1} parent=1 // pred_region
      _
    $region13: #{mlp_encoder_forward.1} parent=1 // pred_fallthru
      _
    // Predicated region
    $region14: #{mlp_encoder_forward.1} parent=1 // pred_check
      _
    $region15: #{mlp_encoder_forward.1} parent=1 // pred_check_branch
      %30 = sbr.rel (0) target = $region17
    $region16: #{mlp_encoder_forward.1} parent=1 // pred_region
      %s32 = ssub.s32 1024, 1024
      %33 = vsyncadd [#allocation6], %s32
      %s34 = sshll.u32 [#allocation5], 4
      %s35 = int_to_ptr.vmem [resolvable:$true] %s34
      %40 = dma.hbm_to_vmem [thread:$0]  %s3, 1024, %s35, [#allocation6], 64, 64, 4
    $region17: #{mlp_encoder_forward.1} parent=1 // pred_fallthru
      _
    // Predicated region
    $region18: #{mlp_encoder_forward.1} parent=1 // pred_check
      _
    $region19: #{mlp_encoder_forward.1} parent=1 // pred_check_branch
      %42 = sbr.rel (0) target = $region21
    $region20: #{mlp_encoder_forward.1} parent=1 // pred_region
      _
    $region21: #{mlp_encoder_forward.1} parent=1 // pred_fallthru
      _
    // Predicated region
    $region22: #{mlp_encoder_forward.1} parent=1 // pred_check
      _
    $region23: #{mlp_encoder_forward.1} parent=1 // pred_check_branch
      %44 = sbr.rel (0) target = $region25
    $region24: #{mlp_encoder_forward.1} parent=1 // pred_region
      %45 = dma.done [#allocation3], 1024
    $region25: #{mlp_encoder_forward.1} parent=1 // pred_fallthru
      _
    // Predicated region
    $region26: #{mlp_encoder_forward.1} parent=1 // pred_check
      _
    $region27: #{mlp_encoder_forward.1} parent=1 // pred_check_branch
      %47 = sbr.rel (0) target = $region29
    $region28: #{mlp_encoder_forward.1} parent=1 // pred_region
      %48 = dma.done [#allocation6], 1024
    $region29: #{mlp_encoder_forward.1} parent=1 // pred_fallthru
      _
    %v50 = vld [vmem:[%s0] sm:$0xf]
    %v51 = vld [vmem:[#allocation2] sm:$0xf]
    %v52 = vld [vmem:[#allocation2 + $0x4] sm:$0xf]
    %v53 = vld [vmem:[#allocation2 + $0x8] sm:$0xf]
    %v54 = vld [vmem:[#allocation2 + $0xc] sm:$0xf]
    %v55 = vld [vmem:[#allocation2 + $0x10] sm:$0xf]
    %v56 = vld [vmem:[#allocation2 + $0x14] sm:$0xf]
    %v57 = vld [vmem:[#allocation2 + $0x18] sm:$0xf]
    %v58 = vld [vmem:[#allocation2 + $0x1c] sm:$0xf]
    %v59 = vld [vmem:[#allocation2 + $0x20] sm:$0xf]
    %v60 = vld [vmem:[#allocation2 + $0x24] sm:$0xf]
    %v61 = vld [vmem:[#allocation2 + $0x28] sm:$0xf]
    %v62 = vld [vmem:[#allocation2 + $0x2c] sm:$0xf]
    %v63 = vld [vmem:[#allocation2 + $0x30] sm:$0xf]
    %v64 = vld [vmem:[#allocation2 + $0x34] sm:$0xf]
    %v65 = vld [vmem:[#allocation2 + $0x38] sm:$0xf]
    %v66 = vld [vmem:[#allocation2 + $0x3c] sm:$0xf]
    %v67 = vld [vmem:[%s2] sm:$0x1]
    %v69 = vlaneseq
    %v70 = vshrl.u32 %v69, 7
    %v71 = vsub.s32 0, %v70
    %v72 = vrot.slane %v67, %v71
    %v90 = vunpack.c.l.b16 %v51
    %v91 = vunpack.c.l.b16 %v52
    %v92 = vunpack.c.l.b16 %v53
    %v93 = vunpack.c.l.b16 %v54
    %v94 = vunpack.c.l.b16 %v55
    %v95 = vunpack.c.l.b16 %v56
    %v96 = vunpack.c.l.b16 %v57
    %v97 = vunpack.c.l.b16 %v58
    %v98 = vunpack.c.l.b16 %v59
    %v99 = vunpack.c.l.b16 %v60
    %v100 = vunpack.c.l.b16 %v61
    %v101 = vunpack.c.l.b16 %v62
    %v102 = vunpack.c.l.b16 %v63
    %v103 = vunpack.c.l.b16 %v64
    %v104 = vunpack.c.l.b16 %v65
    %v105 = vunpack.c.l.b16 %v66
    %v106 = vpack.c.b16 %v91, %v90
    %v107 = vpack.c.b16 %v93, %v92
    %v108 = vpack.c.b16 %v95, %v94
    %v109 = vpack.c.b16 %v97, %v96
    %v110 = vpack.c.b16 %v99, %v98
    %v111 = vpack.c.b16 %v101, %v100
    %v112 = vpack.c.b16 %v103, %v102
    %v113 = vpack.c.b16 %v105, %v104
    %122 = vmatprep.subr.bf16.mxu0 0
    %123 = vmatpush1.bf16.msra.mxu0 %v106
    %124 = vmatprep.subr.bf16.mxu0 0
    %125 = vmatpush1.bf16.msra.mxu0 %v107
    %126 = vmatprep.subr.bf16.mxu0 0
    %127 = vmatpush1.bf16.msra.mxu0 %v108
    %128 = vmatprep.subr.bf16.mxu0 0
    %129 = vmatpush1.bf16.msra.mxu0 %v109
    %130 = vmatprep.subr.bf16.mxu0 0
    %131 = vmatpush1.bf16.msra.mxu0 %v110
    %132 = vmatprep.subr.bf16.mxu0 0
    %133 = vmatpush1.bf16.msra.mxu0 %v111
    %134 = vmatprep.subr.bf16.mxu0 0
    %135 = vmatpush1.bf16.msra.mxu0 %v112
    %136 = vmatprep.subr.bf16.mxu0 0
    %137 = vmatpush1.bf16.msra.mxu0 %v113
    %138 = vmatprep.subr.bf16.mxu0 0
    %139 = vmatpush1.bf16.msra.mxu0 0
    %140 = vmatprep.subr.bf16.mxu0 0
    %141 = vmatpush1.bf16.msra.mxu0 0
    %142 = vmatprep.subr.bf16.mxu0 0
    %143 = vmatpush1.bf16.msra.mxu0 0
    %144 = vmatprep.subr.bf16.mxu0 0
    %145 = vmatpush1.bf16.msra.mxu0 0
    %146 = vmatprep.subr.bf16.mxu0 0
    %147 = vmatpush1.bf16.msra.mxu0 0
    %148 = vmatprep.subr.bf16.mxu0 0
    %149 = vmatpush1.bf16.msra.mxu0 0
    %150 = vmatprep.subr.bf16.mxu0 0
    %151 = vmatpush1.bf16.msra.mxu0 0
    %152 = vmatprep.subr.bf16.mxu0 0
    %153 = vmatpush1.bf16.msra.mxu0 0
    %154 = vmatprep.mubr.bf16.mxu0 0
    %155 = vmatmul.mubr.bf16.gmra.mrb[0].mxu0 %v50
    %v156 = vpop.f32.mrb[0].mxu0
    %v157 = vadd.f32 %v72, %v156
    %v158 = vpop.f32.mrb[0].mxu0
    %v159 = vpop.f32.mrb[0].mxu0
    %v160 = vpop.f32.mrb[0].mxu0
    %161 = vdwg.mxu0
    %v162 = vmax.f32 %v157, 0.0
    %v163 = vld [vmem:[#allocation5] sm:$0xf]
    %v164 = vld [vmem:[#allocation5 + $0x4] sm:$0xf]
    %v165 = vld [vmem:[#allocation5 + $0x8] sm:$0xf]
    %v166 = vld [vmem:[#allocation5 + $0xc] sm:$0xf]
    %v167 = vld [vmem:[#allocation5 + $0x10] sm:$0xf]
    %v168 = vld [vmem:[#allocation5 + $0x14] sm:$0xf]
    %v169 = vld [vmem:[#allocation5 + $0x18] sm:$0xf]
    %v170 = vld [vmem:[#allocation5 + $0x1c] sm:$0xf]
    %v171 = vld [vmem:[#allocation5 + $0x20] sm:$0xf]
    %v172 = vld [vmem:[#allocation5 + $0x24] sm:$0xf]
    %v173 = vld [vmem:[#allocation5 + $0x28] sm:$0xf]
    %v174 = vld [vmem:[#allocation5 + $0x2c] sm:$0xf]
    %v175 = vld [vmem:[#allocation5 + $0x30] sm:$0xf]
    %v176 = vld [vmem:[#allocation5 + $0x34] sm:$0xf]
    %v177 = vld [vmem:[#allocation5 + $0x38] sm:$0xf]
    %v178 = vld [vmem:[#allocation5 + $0x3c] sm:$0xf]
    %v179 = vld [vmem:[%s4] sm:$0x1]
    %v180 = vpack.c.bf16 %v162, %v162
    %v182 = vlaneseq
    %v183 = vshrl.u32 %v182, 7
    %v184 = vsub.s32 0, %v183
    %v185 = vrot.slane %v179, %v184
    %v203 = vunpack.c.l.b16 %v163
    %v204 = vunpack.c.l.b16 %v164
    %v205 = vunpack.c.l.b16 %v165
    %v206 = vunpack.c.l.b16 %v166
    %v207 = vunpack.c.l.b16 %v167
    %v208 = vunpack.c.l.b16 %v168
    %v209 = vunpack.c.l.b16 %v169
    %v210 = vunpack.c.l.b16 %v170
    %v211 = vunpack.c.l.b16 %v171
    %v212 = vunpack.c.l.b16 %v172
    %v213 = vunpack.c.l.b16 %v173
    %v214 = vunpack.c.l.b16 %v174
    %v215 = vunpack.c.l.b16 %v175
    %v216 = vunpack.c.l.b16 %v176
    %v217 = vunpack.c.l.b16 %v177
    %v218 = vunpack.c.l.b16 %v178
    %v219 = vpack.c.b16 %v204, %v203
    %v220 = vpack.c.b16 %v206, %v205
    %v221 = vpack.c.b16 %v208, %v207
    %v222 = vpack.c.b16 %v210, %v209
    %v223 = vpack.c.b16 %v212, %v211
    %v224 = vpack.c.b16 %v214, %v213
    %v225 = vpack.c.b16 %v216, %v215
    %v226 = vpack.c.b16 %v218, %v217
    %235 = vmatprep.subr.bf16.mxu0 0
    %236 = vmatpush1.bf16.msra.mxu0 %v219
    %237 = vmatprep.subr.bf16.mxu0 0
    %238 = vmatpush1.bf16.msra.mxu0 %v220
    %239 = vmatprep.subr.bf16.mxu0 0
    %240 = vmatpush1.bf16.msra.mxu0 %v221
    %241 = vmatprep.subr.bf16.mxu0 0
    %242 = vmatpush1.bf16.msra.mxu0 %v222
    %243 = vmatprep.subr.bf16.mxu0 0
    %244 = vmatpush1.bf16.msra.mxu0 %v223
    %245 = vmatprep.subr.bf16.mxu0 0
    %246 = vmatpush1.bf16.msra.mxu0 %v224
    %247 = vmatprep.subr.bf16.mxu0 0
    %248 = vmatpush1.bf16.msra.mxu0 %v225
    %249 = vmatprep.subr.bf16.mxu0 0
    %250 = vmatpush1.bf16.msra.mxu0 %v226
    %251 = vmatprep.subr.bf16.mxu0 0
    %252 = vmatpush1.bf16.msra.mxu0 0
    %253 = vmatprep.subr.bf16.mxu0 0
    %254 = vmatpush1.bf16.msra.mxu0 0
    %255 = vmatprep.subr.bf16.mxu0 0
    %256 = vmatpush1.bf16.msra.mxu0 0
    %257 = vmatprep.subr.bf16.mxu0 0
    %258 = vmatpush1.bf16.msra.mxu0 0
    %259 = vmatprep.subr.bf16.mxu0 0
    %260 = vmatpush1.bf16.msra.mxu0 0
    %261 = vmatprep.subr.bf16.mxu0 0
    %262 = vmatpush1.bf16.msra.mxu0 0
    %263 = vmatprep.subr.bf16.mxu0 0
    %264 = vmatpush1.bf16.msra.mxu0 0
    %265 = vmatprep.subr.bf16.mxu0 0
    %266 = vmatpush1.bf16.msra.mxu0 0
    %267 = vmatprep.mubr.bf16.mxu0 0
    %268 = vmatmul.mubr.bf16.gmra.mrb[0].mxu0 %v180
    %v269 = vpop.f32.mrb[0].mxu0
    %v270 = vadd.f32 %v185, %v269
    %v271 = vpop.f32.mrb[0].mxu0
    %v272 = vpop.f32.mrb[0].mxu0
    %v273 = vpop.f32.mrb[0].mxu0
    %274 = vdwg.mxu0
    %v275 = vmax.f32 %v270, 0.0
    %276 = vst [vmem:[#allocation7] sm:$0xff] %v275
    // Predicated region
    $region30: #{mlp_encoder_forward.1} parent=1 // pred_check
      _
    $region31: #{mlp_encoder_forward.1} parent=1 // pred_check_branch
      %278 = sbr.rel (0) target = $region33
    $region32: #{mlp_encoder_forward.1} parent=1 // pred_region
      %s280 = ssub.s32 128, 128
      %281 = vsyncadd [#allocation4], %s280
      %s283 = sshll.u32 [#allocation7], 4
      %s284 = int_to_ptr.vmem [resolvable:$true] %s283
      %286 = dma.vmem_to_hbm [thread:$0]  %s284, 128, %s5, [#allocation4]
    $region33: #{mlp_encoder_forward.1} parent=1 // pred_fallthru
      _
    // Predicated region
    $region34: #{mlp_encoder_forward.1} parent=1 // pred_check
      _
    $region35: #{mlp_encoder_forward.1} parent=1 // pred_check_branch
      %288 = sbr.rel (0) target = $region37
    $region36: #{mlp_encoder_forward.1} parent=1 // pred_region
      %289 = dma.done [#allocation4], 128
    $region37: #{mlp_encoder_forward.1} parent=1 // pred_fallthru
      _
    %290 = vsyncpa [#allocation3], 1
    %291 = vsyncpa [#allocation6], 1
    %292 = vsyncpa [#allocation4], 1

// kernel: mlp_encoder_forward.1
$region0: #{mlp_encoder_forward.1}
  #allocation0 [shape = 'u32[]', space=smem, size = 0x4, offset = 0x4, fixed_abs, tag = 'smem constant byte address 0x4 - core index']
  #allocation1 [shape = 'u32[144,128]{1,0:T(1,128)}', space=vmem, size = 0x12000, scoped, tag = 'internal scratch']
  %s0 = inlined_call_operand.vmem [shape: bf16[8,128], index: 0, kind: input, shape index: {}]
  %s1 = inlined_call_operand.hbm [shape: bf16[128,128], index: 1, kind: input, shape index: {}]
  %s2 = inlined_call_operand.vmem [shape: f32[1,128], index: 2, kind: input, shape index: {}]
  %s3 = inlined_call_operand.hbm [shape: bf16[128,128], index: 3, kind: input, shape index: {}]
  %s4 = inlined_call_operand.vmem [shape: f32[1,128], index: 4, kind: input, shape index: {}]
  %s5 = inlined_call_operand.hbm [shape: f32[8,128], index: 5, kind: output, shape index: {}]
  %s6 = sld [smem:[#allocation0]]
  $region38: #{mlp_encoder_forward.1} parent=0
    _
  %s8 = ssub.s32 1, %s6
  %s9 = scalar_select 0, %s8, %s6
  $region1: #{mlp_encoder_forward.1} parent=0
    #allocation2 [shape = 'u8[32768]{0}', space=vmem, size = 0x8000, scoped, tag = 'input window, operand 1, single buffered']
    #allocation3 [shape = 's32[1]{0}', space=sflag, size = 0x4, scoped, tag = 'scoped memory for mlp_encoder_forward.1']
    #allocation4 [shape = 's32[1]{0}', space=sflag, size = 0x4, scoped, tag = 'scoped memory for mlp_encoder_forward.1']
    #allocation5 [shape = 'u8[32768]{0}', space=vmem, size = 0x8000, scoped, tag = 'input window, operand 3, single buffered']
    #allocation6 [shape = 's32[1]{0}', space=sflag, size = 0x4, scoped, tag = 'scoped memory for mlp_encoder_forward.1']
    #allocation7 [shape = 'u8[4096]{0}', space=vmem, size = 0x1000, scoped, tag = 'output window, operand 0, single buffered']
    %10 = vsyncpa [#allocation3], 0
    %11 = vsyncpa [#allocation6], 0
    %12 = vsyncpa [#allocation4], 0
    // Predicated region
    $region2: #{mlp_encoder_forward.1} parent=1 // pred_check
      _
    $region3: #{mlp_encoder_forward.1} parent=1 // pred_check_branch
      %14 = sbr.rel (0) target = $region5
    $region4: #{mlp_encoder_forward.1} parent=1 // pred_region
      _
    $region5: #{mlp_encoder_forward.1} parent=1 // pred_fallthru
      _
    // Predicated region
    $region6: #{mlp_encoder_forward.1} parent=1 // pred_check
      _
    $region7: #{mlp_encoder_forward.1} parent=1 // pred_check_branch
      %16 = sbr.rel (0) target = $region9
    $region8: #{mlp_encoder_forward.1} parent=1 // pred_region
      %s18 = ssub.s32 1024, 1024
      %19 = vsyncadd [#allocation3], %s18
      %s20 = sshll.u32 [#allocation2], 4
      %s21 = int_to_ptr.vmem [resolvable:$true] %s20
      %26 = dma.hbm_to_vmem [thread:$0]  %s1, 1024, %s21, [#allocation3], 64, 64, 4
    $region9: #{mlp_encoder_forward.1} parent=1 // pred_fallthru
      _
    // Predicated region
    $region10: #{mlp_encoder_forward.1} parent=1 // pred_check
      _
    $region11: #{mlp_encoder_forward.1} parent=1 // pred_check_branch
      %28 = sbr.rel (0) target = $region13
    $region12: #{mlp_encoder_forward.1} parent=1 // pred_region
      _
    $region13: #{mlp_encoder_forward.1} parent=1 // pred_fallthru
      _
    // Predicated region
    $region14: #{mlp_encoder_forward.1} parent=1 // pred_check
      _
    $region15: #{mlp_encoder_forward.1} parent=1 // pred_check_branch
      %30 = sbr.rel (0) target = $region17
    $region16: #{mlp_encoder_forward.1} parent=1 // pred_region
      %s32 = ssub.s32 1024, 1024
      %33 = vsyncadd [#allocation6], %s32
      %s34 = sshll.u32 [#allocation5], 4
      %s35 = int_to_ptr.vmem [resolvable:$true] %s34
      %40 = dma.hbm_to_vmem [thread:$0]  %s3, 1024, %s35, [#allocation6], 64, 64, 4
    $region17: #{mlp_encoder_forward.1} parent=1 // pred_fallthru
      _
    // Predicated region
    $region18: #{mlp_encoder_forward.1} parent=1 // pred_check
      _
    $region19: #{mlp_encoder_forward.1} parent=1 // pred_check_branch
      %42 = sbr.rel (0) target = $region21
    $region20: #{mlp_encoder_forward.1} parent=1 // pred_region
      _
    $region21: #{mlp_encoder_forward.1} parent=1 // pred_fallthru
      _
    // Predicated region
    $region22: #{mlp_encoder_forward.1} parent=1 // pred_check
      _
    $region23: #{mlp_encoder_forward.1} parent=1 // pred_check_branch
      %44 = sbr.rel (0) target = $region25
    $region24: #{mlp_encoder_forward.1} parent=1 // pred_region
      %45 = dma.done [#allocation3], 1024
    $region25: #{mlp_encoder_forward.1} parent=1 // pred_fallthru
      _
    // Predicated region
    $region26: #{mlp_encoder_forward.1} parent=1 // pred_check
      _
    $region27: #{mlp_encoder_forward.1} parent=1 // pred_check_branch
      %47 = sbr.rel (0) target = $region29
    $region28: #{mlp_encoder_forward.1} parent=1 // pred_region
      %48 = dma.done [#allocation6], 1024
    $region29: #{mlp_encoder_forward.1} parent=1 // pred_fallthru
      _
    %v50 = vld [vmem:[%s0] sm:$0xf]
    %v51 = vld [vmem:[#allocation2] sm:$0xf]
    %v52 = vld [vmem:[#allocation2 + $0x4] sm:$0xf]
    %v53 = vld [vmem:[#allocation2 + $0x8] sm:$0xf]
    %v54 = vld [vmem:[#allocation2 + $0xc] sm:$0xf]
    %v55 = vld [vmem:[#allocation2 + $0x10] sm:$0xf]
    %v56 = vld [vmem:[#allocation2 + $0x14] sm:$0xf]
    %v57 = vld [vmem:[#allocation2 + $0x18] sm:$0xf]
    %v58 = vld [vmem:[#allocation2 + $0x1c] sm:$0xf]
    %v59 = vld [vmem:[#allocation2 + $0x20] sm:$0xf]
    %v60 = vld [vmem:[#allocation2 + $0x24] sm:$0xf]
    %v61 = vld [vmem:[#allocation2 + $0x28] sm:$0xf]
    %v62 = vld [vmem:[#allocation2 + $0x2c] sm:$0xf]
    %v63 = vld [vmem:[#allocation2 + $0x30] sm:$0xf]
    %v64 = vld [vmem:[#allocation2 + $0x34] sm:$0xf]
    %v65 = vld [vmem:[#allocation2 + $0x38] sm:$0xf]
    %v66 = vld [vmem:[#allocation2 + $0x3c] sm:$0xf]
    %v67 = vld [vmem:[%s2] sm:$0x1]
    %v69 = vlaneseq
    %v70 = vshrl.u32 %v69, 7
    %v71 = vsub.s32 0, %v70
    %v72 = vrot.slane %v67, %v71
    %v90 = vunpack.c.l.b16 %v51
    %v91 = vunpack.c.l.b16 %v52
    %v92 = vunpack.c.l.b16 %v53
    %v93 = vunpack.c.l.b16 %v54
    %v94 = vunpack.c.l.b16 %v55
    %v95 = vunpack.c.l.b16 %v56
    %v96 = vunpack.c.l.b16 %v57
    %v97 = vunpack.c.l.b16 %v58
    %v98 = vunpack.c.l.b16 %v59
    %v99 = vunpack.c.l.b16 %v60
    %v100 = vunpack.c.l.b16 %v61
    %v101 = vunpack.c.l.b16 %v62
    %v102 = vunpack.c.l.b16 %v63
    %v103 = vunpack.c.l.b16 %v64
    %v104 = vunpack.c.l.b16 %v65
    %v105 = vunpack.c.l.b16 %v66
    %v106 = vpack.c.b16 %v91, %v90
    %v107 = vpack.c.b16 %v93, %v92
    %v108 = vpack.c.b16 %v95, %v94
    %v109 = vpack.c.b16 %v97, %v96
    %v110 = vpack.c.b16 %v99, %v98
    %v111 = vpack.c.b16 %v101, %v100
    %v112 = vpack.c.b16 %v103, %v102
    %v113 = vpack.c.b16 %v105, %v104
    %122 = vmatprep.subr.bf16.mxu0 0
    %123 = vmatpush1.bf16.msra.mxu0 %v106
    %124 = vmatprep.subr.bf16.mxu0 0
    %125 = vmatpush1.bf16.msra.mxu0 %v107
    %126 = vmatprep.subr.bf16.mxu0 0
    %127 = vmatpush1.bf16.msra.mxu0 %v108
    %128 = vmatprep.subr.bf16.mxu0 0
    %129 = vmatpush1.bf16.msra.mxu0 %v109
    %130 = vmatprep.subr.bf16.mxu0 0
    %131 = vmatpush1.bf16.msra.mxu0 %v110
    %132 = vmatprep.subr.bf16.mxu0 0
    %133 = vmatpush1.bf16.msra.mxu0 %v111
    %134 = vmatprep.subr.bf16.mxu0 0
    %135 = vmatpush1.bf16.msra.mxu0 %v112
    %136 = vmatprep.subr.bf16.mxu0 0
    %137 = vmatpush1.bf16.msra.mxu0 %v113
    %138 = vmatprep.subr.bf16.mxu0 0
    %139 = vmatpush1.bf16.msra.mxu0 0
    %140 = vmatprep.subr.bf16.mxu0 0
    %141 = vmatpush1.bf16.msra.mxu0 0
    %142 = vmatprep.subr.bf16.mxu0 0
    %143 = vmatpush1.bf16.msra.mxu0 0
    %144 = vmatprep.subr.bf16.mxu0 0
    %145 = vmatpush1.bf16.msra.mxu0 0
    %146 = vmatprep.subr.bf16.mxu0 0
    %147 = vmatpush1.bf16.msra.mxu0 0
    %148 = vmatprep.subr.bf16.mxu0 0
    %149 = vmatpush1.bf16.msra.mxu0 0
    %150 = vmatprep.subr.bf16.mxu0 0
    %151 = vmatpush1.bf16.msra.mxu0 0
    %152 = vmatprep.subr.bf16.mxu0 0
    %153 = vmatpush1.bf16.msra.mxu0 0
    %154 = vmatprep.mubr.bf16.mxu0 0
    %155 = vmatmul.mubr.bf16.gmra.mrb[0].mxu0 %v50
    %v156 = vpop.f32.mrb[0].mxu0
    %v157 = vadd.f32 %v72, %v156
    %v158 = vpop.f32.mrb[0].mxu0
    %v159 = vpop.f32.mrb[0].mxu0
    %v160 = vpop.f32.mrb[0].mxu0
    %161 = vdwg.mxu0
    %v162 = vmax.f32 %v157, 0.0
    %v163 = vld [vmem:[#allocation5] sm:$0xf]
    %v164 = vld [vmem:[#allocation5 + $0x4] sm:$0xf]
    %v165 = vld [vmem:[#allocation5 + $0x8] sm:$0xf]
    %v166 = vld [vmem:[#allocation5 + $0xc] sm:$0xf]
    %v167 = vld [vmem:[#allocation5 + $0x10] sm:$0xf]
    %v168 = vld [vmem:[#allocation5 + $0x14] sm:$0xf]
    %v169 = vld [vmem:[#allocation5 + $0x18] sm:$0xf]
    %v170 = vld [vmem:[#allocation5 + $0x1c] sm:$0xf]
    %v171 = vld [vmem:[#allocation5 + $0x20] sm:$0xf]
    %v172 = vld [vmem:[#allocation5 + $0x24] sm:$0xf]
    %v173 = vld [vmem:[#allocation5 + $0x28] sm:$0xf]
    %v174 = vld [vmem:[#allocation5 + $0x2c] sm:$0xf]
    %v175 = vld [vmem:[#allocation5 + $0x30] sm:$0xf]
    %v176 = vld [vmem:[#allocation5 + $0x34] sm:$0xf]
    %v177 = vld [vmem:[#allocation5 + $0x38] sm:$0xf]
    %v178 = vld [vmem:[#allocation5 + $0x3c] sm:$0xf]
    %v179 = vld [vmem:[%s4] sm:$0x1]
    %v180 = vpack.c.bf16 %v162, %v162
    %v182 = vlaneseq
    %v183 = vshrl.u32 %v182, 7
    %v184 = vsub.s32 0, %v183
    %v185 = vrot.slane %v179, %v184
    %v203 = vunpack.c.l.b16 %v163
    %v204 = vunpack.c.l.b16 %v164
    %v205 = vunpack.c.l.b16 %v165
    %v206 = vunpack.c.l.b16 %v166
    %v207 = vunpack.c.l.b16 %v167
    %v208 = vunpack.c.l.b16 %v168
    %v209 = vunpack.c.l.b16 %v169
    %v210 = vunpack.c.l.b16 %v170
    %v211 = vunpack.c.l.b16 %v171
    %v212 = vunpack.c.l.b16 %v172
    %v213 = vunpack.c.l.b16 %v173
    %v214 = vunpack.c.l.b16 %v174
    %v215 = vunpack.c.l.b16 %v175
    %v216 = vunpack.c.l.b16 %v176
    %v217 = vunpack.c.l.b16 %v177
    %v218 = vunpack.c.l.b16 %v178
    %v219 = vpack.c.b16 %v204, %v203
    %v220 = vpack.c.b16 %v206, %v205
    %v221 = vpack.c.b16 %v208, %v207
    %v222 = vpack.c.b16 %v210, %v209
    %v223 = vpack.c.b16 %v212, %v211
    %v224 = vpack.c.b16 %v214, %v213
    %v225 = vpack.c.b16 %v216, %v215
    %v226 = vpack.c.b16 %v218, %v217
    %235 = vmatprep.subr.bf16.mxu0 0
    %236 = vmatpush1.bf16.msra.mxu0 %v219
    %237 = vmatprep.subr.bf16.mxu0 0
    %238 = vmatpush1.bf16.msra.mxu0 %v220
    %239 = vmatprep.subr.bf16.mxu0 0
    %240 = vmatpush1.bf16.msra.mxu0 %v221
    %241 = vmatprep.subr.bf16.mxu0 0
    %242 = vmatpush1.bf16.msra.mxu0 %v222
    %243 = vmatprep.subr.bf16.mxu0 0
    %244 = vmatpush1.bf16.msra.mxu0 %v223
    %245 = vmatprep.subr.bf16.mxu0 0
    %246 = vmatpush1.bf16.msra.mxu0 %v224
    %247 = vmatprep.subr.bf16.mxu0 0
    %248 = vmatpush1.bf16.msra.mxu0 %v225
    %249 = vmatprep.subr.bf16.mxu0 0
    %250 = vmatpush1.bf16.msra.mxu0 %v226
    %251 = vmatprep.subr.bf16.mxu0 0
    %252 = vmatpush1.bf16.msra.mxu0 0
    %253 = vmatprep.subr.bf16.mxu0 0
    %254 = vmatpush1.bf16.msra.mxu0 0
    %255 = vmatprep.subr.bf16.mxu0 0
    %256 = vmatpush1.bf16.msra.mxu0 0
    %257 = vmatprep.subr.bf16.mxu0 0
    %258 = vmatpush1.bf16.msra.mxu0 0
    %259 = vmatprep.subr.bf16.mxu0 0
    %260 = vmatpush1.bf16.msra.mxu0 0
    %261 = vmatprep.subr.bf16.mxu0 0
    %262 = vmatpush1.bf16.msra.mxu0 0
    %263 = vmatprep.subr.bf16.mxu0 0
    %264 = vmatpush1.bf16.msra.mxu0 0
    %265 = vmatprep.subr.bf16.mxu0 0
    %266 = vmatpush1.bf16.msra.mxu0 0
    %267 = vmatprep.mubr.bf16.mxu0 0
    %268 = vmatmul.mubr.bf16.gmra.mrb[0].mxu0 %v180
    %v269 = vpop.f32.mrb[0].mxu0
    %v270 = vadd.f32 %v185, %v269
    %v271 = vpop.f32.mrb[0].mxu0
    %v272 = vpop.f32.mrb[0].mxu0
    %v273 = vpop.f32.mrb[0].mxu0
    %274 = vdwg.mxu0
    %v275 = vmax.f32 %v270, 0.0
    %276 = vst [vmem:[#allocation7] sm:$0xff] %v275
    // Predicated region
    $region30: #{mlp_encoder_forward.1} parent=1 // pred_check
      _
    $region31: #{mlp_encoder_forward.1} parent=1 // pred_check_branch
      %278 = sbr.rel (0) target = $region33
    $region32: #{mlp_encoder_forward.1} parent=1 // pred_region
      %s280 = ssub.s32 128, 128
      %281 = vsyncadd [#allocation4], %s280
      %s283 = sshll.u32 [#allocation7], 4
      %s284 = int_to_ptr.vmem [resolvable:$true] %s283
      %286 = dma.vmem_to_hbm [thread:$0]  %s284, 128, %s5, [#allocation4]
    $region33: #{mlp_encoder_forward.1} parent=1 // pred_fallthru
      _
    // Predicated region
    $region34: #{mlp_encoder_forward.1} parent=1 // pred_check
      _
    $region35: #{mlp_encoder_forward.1} parent=1 // pred_check_branch
      %288 = sbr.rel (0) target = $region37
    $region36: #{mlp_encoder_forward.1} parent=1 // pred_region
      %289 = dma.done [#allocation4], 128
    $region37: #{mlp_encoder_forward.1} parent=1 // pred_fallthru
      _
    %290 = vsyncpa [#allocation3], 1
    %291 = vsyncpa [#allocation6], 1
    %292 = vsyncpa [#allocation4], 1

</llo_original>
